<compile_context>
chip_gen: v6e
topology: v6e:2x2x1
jax: 0.10.0
libtpu: 0.0.40
codegen_flags: <defaults>
</compile_context>

<pallas_src>
import functools

import jax
import jax.numpy as jnp
from jax.experimental import pallas as pl
from jax.experimental.pallas import tpu as pltpu


N_SHAPES = 9
LANES = 128      # lane width of every packed row
HID_OFF = 64     # column offset of `hidden` inside the packed input row

# Row offsets of the blocks inside the packed parameter slab.
_W1_R, _WH_R, _WRX_R, _WMAP_R, _WNUM_R, _BIAS_R = 0, 128, 256, 384, 512, 640
_SLAB_ROWS = 648


def _rnn_classifier_kernel(in_ref, p_ref, out_ref):
  """5 dependent MXU dots; all column/row semantics are baked into p_ref."""
  f32 = jnp.float32
  x_in = in_ref[...]                                  # (B,128) [xy|shape|0|hidden|0]

  w1 = p_ref[_W1_R:_W1_R + 128, :]                    # input -> [x_pre | shape_emb9]
  wh = p_ref[_WH_R:_WH_R + 128, :]                    # input(hidden cols) -> rnn h-part
  wrx = p_ref[_WRX_R:_WRX_R + 128, :]                 # x -> [new_hidden | x_out]
  wmap = p_ref[_WMAP_R:_WMAP_R + 128, :]              # r(x_out cols) -> map
  wnum = p_ref[_WNUM_R:_WNUM_R + 128, :]              # sigmoid(map) -> num
  bias = p_ref[_BIAS_R:_BIAS_R + 8, :]                # rows: b1, br, bmap, bnum, 0...

  # (1) embedding + folded(baby RNN -> shape_readout) in a single dot.
  #     cols [0:H) = pre-activation embedding, cols [H:H+9) = shape_emb9.
  y1 = jnp.dot(x_in, w1, preferred_element_type=f32) + bias[0:1, :]
  # (2) hidden-state contribution of the main RNN2 (independent of y1 -> issues early).
  r_h = jnp.dot(x_in, wh, preferred_element_type=f32)
  # LeakyReLU(0.1).  Extra cols of y1 are either zero or killed by zero rows of wrx.
  x_act = jnp.where(y1 > 0, y1, 0.1 * y1)
  # (3) main RNN2, i2h/i2o column-stacked: cols [0:H)=new hidden, [H:2H)=x_out.
  r = jnp.dot(x_act, wrx, preferred_element_type=f32) + r_h + bias[1:2, :]
  # (4) map readout (reads x_out columns through wmap's row placement).
  m = jnp.dot(r, wmap, preferred_element_type=f32) + bias[2:3, :]
  sig = jax.nn.sigmoid(m)
  # (5) num readout (detach=False: sigmoid output used directly).
  num = jnp.dot(sig, wnum, preferred_element_type=f32) + bias[3:4, :]

  out_ref[0, :, :] = num    # cols [0:output_size)
  out_ref[1, :, :] = m      # cols [0:map_size)
  out_ref[2, :, :] = y1     # cols [H:H+9) hold shape_emb9
  out_ref[3, :, :] = r      # cols [0:H)   hold new hidden


def pack_params(params, *, xy_dim, hidden_size, map_size, output_size):
  """Fold the linear baby RNN and pack everything into one (648,128) f32 slab."""
  f32 = jnp.float32
  H = hidden_size
  assert xy_dim + 3 * N_SHAPES <= HID_OFF
  assert HID_OFF + H <= LANES and 2 * H <= LANES and H + N_SHAPES <= LANES
  assert map_size <= LANES and output_size <= LANES

  # ---- fold baby RNN (act=None => linear) + shape_readout into one affine map ----
  # baby_h_8 = sum_{t=0..7} (s_t @ Wx + b) @ Wh^(7-t)
  # shape_emb27 = s_8 @ bi2o_wx + baby_h_8 @ bi2o_wh + bi2o_b
  wh_b = params["bi2h_wh"]
  rows = [None] * N_SHAPES
  b_acc = jnp.zeros((1, 27), f32)
  p_pow = jnp.eye(27, dtype=f32)                       # = Wh^(7-t)
  for t in range(N_SHAPES - 2, -1, -1):                # t = 7 .. 0
    rows[t] = params["bi2h_wx"] @ p_pow @ params["bi2o_wh"]
    b_acc = b_acc + params["bi2h_b"] @ p_pow
    p_pow = p_pow @ wh_b
  rows[N_SHAPES - 1] = params["bi2o_wx"]
  w_s27 = jnp.concatenate(rows, axis=0)                # (27,27): shape_flat -> shape_emb27
  b_s27 = b_acc @ params["bi2o_wh"] + params["bi2o_b"]

  w_s9 = w_s27 @ params["sr_w"]                        # (27,9)  shape_flat -> shape_emb9
  b_s9 = b_s27 @ params["sr_w"] + params["sr_b"]
  w_sx = w_s9 @ params["emb_wse"]                      # (27,H)  shape_flat -> embedding
  b_x = b_s9 @ params["emb_wse"] + params["emb_b"]

  # ---- block 0: packed input -> [x_pre (0:H) | shape_emb9 (H:H+9)] ----
  w1 = jnp.zeros((LANES, LANES), f32)
  w1 = w1.at[0:xy_dim, 0:H].set(params["emb_wxy"])
  w1 = w1.at[xy_dim:xy_dim + 27, 0:H].set(w_sx)
  w1 = w1.at[xy_dim:xy_dim + 27, H:H + N_SHAPES].set(w_s9)
  b1 = jnp.zeros((1, LANES), f32)
  b1 = b1.at[:, 0:H].set(b_x).at[:, H:H + N_SHAPES].set(b_s9)

  # ---- block 1: hidden columns of packed input -> rnn h-contribution ----
  wh = jnp.zeros((LANES, LANES), f32)
  wh = wh.at[HID_OFF:HID_OFF + H, 0:H].set(params["ri2h_wh"])
  wh = wh.at[HID_OFF:HID_OFF + H, H:2 * H].set(params["ri2o_wh"])

  # ---- block 2: x -> [new_hidden | x_out] (i2h/i2o column-stacked) ----
  wrx = jnp.zeros((LANES, LANES), f32)
  wrx = wrx.at[0:H, 0:H].set(params["ri2h_wx"])
  wrx = wrx.at[0:H, H:2 * H].set(params["ri2o_wx"])
  br = jnp.zeros((1, LANES), f32)
  br = br.at[:, 0:H].set(params["ri2h_b"]).at[:, H:2 * H].set(params["ri2o_b"])

  # ---- block 3: r -> map (reads the x_out columns [H:2H)) ----
  wmap = jnp.zeros((LANES, LANES), f32)
  wmap = wmap.at[H:2 * H, 0:map_size].set(params["map_w"])
  bmap = jnp.zeros((1, LANES), f32).at[:, 0:map_size].set(params["map_b"])

  # ---- block 4: sigmoid(map) -> num (rows >= map_size are zero so the
  #      sigmoid(0)=0.5 padding lanes contribute nothing) ----
  wnum = jnp.zeros((LANES, LANES), f32)
  wnum = wnum.at[0:map_size, 0:output_size].set(params["num_w"])
  bnum = jnp.zeros((1, LANES), f32).at[:, 0:output_size].set(params["num_b"])

  bias_blk = jnp.zeros((8, LANES), f32)
  bias_blk = bias_blk.at[0:1].set(b1).at[1:2].set(br)
  bias_blk = bias_blk.at[2:3].set(bmap).at[3:4].set(bnum)

  slab = jnp.concatenate([w1, wh, wrx, wmap, wnum, bias_blk], axis=0)
  assert slab.shape == (_SLAB_ROWS, LANES)
  return slab


def rnn_classifier_nosymbol_forward(xy, shape, hidden, packed_params, *,
                                    map_size, output_size):
  """xy: (B, xy_dim), shape: (B, 9, 3), hidden: (B, H); params pre-packed."""
  B = xy.shape[0]
  xy_dim = xy.shape[1]
  H = hidden.shape[1]

  # Single lane-dense packed input row per sample: [xy | shape | 0 | hidden | 0].
  x_in = jnp.zeros((B, LANES), jnp.float32)
  x_in = x_in.at[:, 0:xy_dim].set(xy.astype(jnp.float32))
  x_in = x_in.at[:, xy_dim:xy_dim + 3 * N_SHAPES].set(
      shape.reshape(B, 3 * N_SHAPES).astype(jnp.float32))
  x_in = x_in.at[:, HID_OFF:HID_OFF + H].set(hidden.astype(jnp.float32))

  vmem = pl.BlockSpec(memory_space=pltpu.MemorySpace.VMEM)
  # NOTE: for large-batch throughput, add a leading batch grid axis here with
  # dimension_semantics=("parallel",) (uses both TensorCores on v7x) and cast
  # to bf16; at the tiny demo batch this kernel is pure latency so we keep a
  # single gridless invocation (2 input DMAs + 1 output DMA total).
  out = pl.pallas_call(
      _rnn_classifier_kernel,
      out_shape=jax.ShapeDtypeStruct((4, B, LANES), jnp.float32),
      in_specs=[vmem, vmem],
      out_specs=vmem,
  )(x_in, packed_params)

  num = out[0, :, 0:output_size]
  map_ = out[1, :, 0:map_size]
  shape_emb9 = out[2, :, H:H + N_SHAPES]
  new_hidden = out[3, :, 0:H]
  return num, map_, shape_emb9, new_hidden


def _init_params(key, xy_dim, hidden_size, map_size, output_size):
  """Deterministic synthetic parameters (shapes follow the module's __init__)."""
  ks = jax.random.split(key, 24)
  i = iter(range(24))

  def lin(k_w, k_b, fan_in, fan_out):
    lim = 1.0 / jnp.sqrt(jnp.float32(fan_in))
    w = jax.random.uniform(k_w, (fan_in, fan_out), jnp.float32, -lim, lim)
    b = jax.random.uniform(k_b, (1, fan_out), jnp.float32, -lim, lim)
    return w, b

  p = {}
  # baby_rnn = RNN2(3, 27, 27): i2h/i2o are Linear(3 + 27, 27) -> split
  w, b = lin(ks[next(i)], ks[next(i)], 3 + 27, 27)
  p["bi2h_wx"], p["bi2h_wh"], p["bi2h_b"] = w[:3], w[3:], b
  w, b = lin(ks[next(i)], ks[next(i)], 3 + 27, 27)
  p["bi2o_wx"], p["bi2o_wh"], p["bi2o_b"] = w[:3], w[3:], b
  # shape_readout = Linear(27, 9)
  p["sr_w"], p["sr_b"] = lin(ks[next(i)], ks[next(i)], 27, 9)
  # embedding = Linear(xy_dim + 9, hidden) -> split over cat(xy, shape_emb)
  w, b = lin(ks[next(i)], ks[next(i)], xy_dim + 9, hidden_size)
  p["emb_wxy"], p["emb_wse"], p["emb_b"] = w[:xy_dim], w[xy_dim:], b
  # rnn = RNN2(H, H, H): i2h/i2o are Linear(2H, H) -> split
  w, b = lin(ks[next(i)], ks[next(i)], 2 * hidden_size, hidden_size)
  p["ri2h_wx"], p["ri2h_wh"], p["ri2h_b"] = w[:hidden_size], w[hidden_size:], b
  w, b = lin(ks[next(i)], ks[next(i)], 2 * hidden_size, hidden_size)
  p["ri2o_wx"], p["ri2o_wh"], p["ri2o_b"] = w[:hidden_size], w[hidden_size:], b
  # map_readout, num_readout
  p["map_w"], p["map_b"] = lin(ks[next(i)], ks[next(i)], hidden_size, map_size)
  p["num_w"], p["num_b"] = lin(ks[next(i)], ks[next(i)], map_size, output_size)
  return p


def _reference_forward(xy, shape, hidden, p):
  """Pure-JAX reference of the module's exact (unfolded) math."""
  B = xy.shape[0]
  baby_h = jnp.zeros((B, 27), jnp.float32)
  shape_emb = jnp.zeros((B, 27), jnp.float32)
  for i in range(N_SHAPES):
    s_i = shape[:, i, :]
    shape_emb = s_i @ p["bi2o_wx"] + baby_h @ p["bi2o_wh"] + p["bi2o_b"]
    baby_h = s_i @ p["bi2h_wx"] + baby_h @ p["bi2h_wh"] + p["bi2h_b"]
  shape_emb9 = shape_emb @ p["sr_w"] + p["sr_b"]
  x = xy @ p["emb_wxy"] + shape_emb9 @ p["emb_wse"] + p["emb_b"]
  x = jnp.where(x > 0, x, 0.1 * x)
  new_h = x @ p["ri2h_wx"] + hidden @ p["ri2h_wh"] + p["ri2h_b"]
  x_out = x @ p["ri2o_wx"] + hidden @ p["ri2o_wh"] + p["ri2o_b"]
  map_ = x_out @ p["map_w"] + p["map_b"]
  sig = jax.nn.sigmoid(map_)
  num = sig @ p["num_w"] + p["num_b"]
  return num, map_, shape_emb9, new_h


if __name__ == "__main__":
  B = 2
  XY_DIM = 2                 # xy coordinates
  HIDDEN_SIZE = 32
  MAP_SIZE = 16
  OUTPUT_SIZE = 8

  key = jax.random.PRNGKey(0)
  k_xy, k_shape, k_h, k_p = jax.random.split(key, 4)

  xy = jax.random.normal(k_xy, (B, XY_DIM), jnp.float32)
  shape = jax.random.normal(k_shape, (B, N_SHAPES, 3), jnp.float32)
  hidden = jax.random.normal(k_h, (B, HIDDEN_SIZE), jnp.float32)
  params = _init_params(k_p, XY_DIM, HIDDEN_SIZE, MAP_SIZE, OUTPUT_SIZE)

  packed = pack_params(params, xy_dim=XY_DIM, hidden_size=HIDDEN_SIZE,
                       map_size=MAP_SIZE, output_size=OUTPUT_SIZE)

  fwd = jax.jit(functools.partial(rnn_classifier_nosymbol_forward,
                                  map_size=MAP_SIZE, output_size=OUTPUT_SIZE))
  num, map_, shape_emb, new_hidden = jax.block_until_ready(
      fwd(xy, shape, hidden, packed))

  ref = _reference_forward(xy, shape, hidden, params)
  for got, want in zip((num, map_, shape_emb, new_hidden), ref):
    assert got.shape == want.shape and got.dtype == want.dtype
    assert jnp.allclose(got, want, atol=1e-4, rtol=1e-4)

  print("KERNEL_OK")
</pallas_src>

<mosaic_0001>
module attributes {stable_mosaic.version = 11 : i64} {
  func.func @_rnn_classifier_kernel(%arg0: memref<2x128xf32, #tpu.memory_space<vmem>>, %arg1: memref<648x128xf32, #tpu.memory_space<vmem>>, %arg2: memref<4x2x128xf32, #tpu.memory_space<vmem>>) attributes {dimension_semantics = [], scalar_prefetch = 0 : i64, scratch_operands = 0 : i64, tpu.core_type = #tpu.core_type<tc>} {
    %c0 = arith.constant 0 : index
    %c0_0 = arith.constant 0 : index
    %0 = vector.load %arg0[%c0, %c0_0] : memref<2x128xf32, #tpu.memory_space<vmem>>, vector<2x128xf32>
    %c0_1 = arith.constant 0 : index
    %c0_2 = arith.constant 0 : index
    %1 = vector.load %arg1[%c0_1, %c0_2] : memref<648x128xf32, #tpu.memory_space<vmem>>, vector<128x128xf32>
    %c128 = arith.constant 128 : index
    %c0_3 = arith.constant 0 : index
    %2 = vector.load %arg1[%c128, %c0_3] : memref<648x128xf32, #tpu.memory_space<vmem>>, vector<128x128xf32>
    %c256 = arith.constant 256 : index
    %c0_4 = arith.constant 0 : index
    %3 = vector.load %arg1[%c256, %c0_4] : memref<648x128xf32, #tpu.memory_space<vmem>>, vector<128x128xf32>
    %c384 = arith.constant 384 : index
    %c0_5 = arith.constant 0 : index
    %4 = vector.load %arg1[%c384, %c0_5] : memref<648x128xf32, #tpu.memory_space<vmem>>, vector<128x128xf32>
    %c512 = arith.constant 512 : index
    %c0_6 = arith.constant 0 : index
    %5 = vector.load %arg1[%c512, %c0_6] : memref<648x128xf32, #tpu.memory_space<vmem>>, vector<128x128xf32>
    %c640 = arith.constant 640 : index
    %c0_7 = arith.constant 0 : index
    %6 = vector.load %arg1[%c640, %c0_7] : memref<648x128xf32, #tpu.memory_space<vmem>>, vector<8x128xf32>
    %cst = arith.constant dense<0.000000e+00> : vector<2x128xf32>
    %7 = tpu.matmul %0, %1, %cst {dimension_numbers = #tpu.dot_dimension_numbers<[1], [0], [0], [1], [0, 0, 1, 1], [], []>} : vector<2x128xf32>, vector<128x128xf32>, vector<2x128xf32> -> vector<2x128xf32>
    %8 = vector.extract_strided_slice %6 {offsets = [0, 0], sizes = [1, 128], strides = [1, 1]} : vector<8x128xf32> to vector<1x128xf32>
    %9 = vector.broadcast %8 : vector<1x128xf32> to vector<2x128xf32>
    %10 = arith.addf %7, %9 : vector<2x128xf32>
    %cst_8 = arith.constant dense<0.000000e+00> : vector<2x128xf32>
    %11 = tpu.matmul %0, %2, %cst_8 {dimension_numbers = #tpu.dot_dimension_numbers<[1], [0], [0], [1], [0, 0, 1, 1], [], []>} : vector<2x128xf32>, vector<128x128xf32>, vector<2x128xf32> -> vector<2x128xf32>
    %cst_9 = arith.constant 0.000000e+00 : f32
    %12 = vector.broadcast %cst_9 : f32 to vector<2x128xf32>
    %13 = arith.cmpf ogt, %10, %12 : vector<2x128xf32>
    %cst_10 = arith.constant 1.000000e-01 : f32
    %14 = vector.broadcast %cst_10 : f32 to vector<2x128xf32>
    %15 = arith.mulf %14, %10 : vector<2x128xf32>
    %16 = arith.select %13, %10, %15 : vector<2x128xi1>, vector<2x128xf32>
    %cst_11 = arith.constant dense<0.000000e+00> : vector<2x128xf32>
    %17 = tpu.matmul %16, %3, %cst_11 {dimension_numbers = #tpu.dot_dimension_numbers<[1], [0], [0], [1], [0, 0, 1, 1], [], []>} : vector<2x128xf32>, vector<128x128xf32>, vector<2x128xf32> -> vector<2x128xf32>
    %18 = arith.addf %17, %11 : vector<2x128xf32>
    %19 = vector.extract_strided_slice %6 {offsets = [1, 0], sizes = [1, 128], strides = [1, 1]} : vector<8x128xf32> to vector<1x128xf32>
    %20 = vector.broadcast %19 : vector<1x128xf32> to vector<2x128xf32>
    %21 = arith.addf %18, %20 : vector<2x128xf32>
    %cst_12 = arith.constant dense<0.000000e+00> : vector<2x128xf32>
    %22 = tpu.matmul %21, %4, %cst_12 {dimension_numbers = #tpu.dot_dimension_numbers<[1], [0], [0], [1], [0, 0, 1, 1], [], []>} : vector<2x128xf32>, vector<128x128xf32>, vector<2x128xf32> -> vector<2x128xf32>
    %23 = vector.extract_strided_slice %6 {offsets = [2, 0], sizes = [1, 128], strides = [1, 1]} : vector<8x128xf32> to vector<1x128xf32>
    %24 = vector.broadcast %23 : vector<1x128xf32> to vector<2x128xf32>
    %25 = arith.addf %22, %24 : vector<2x128xf32>
    %26 = arith.negf %25 : vector<2x128xf32>
    %27 = math.exp %26 : vector<2x128xf32>
    %cst_13 = arith.constant 1.000000e+00 : f32
    %28 = vector.broadcast %cst_13 : f32 to vector<2x128xf32>
    %29 = arith.addf %28, %27 : vector<2x128xf32>
    %30 = arith.divf %28, %29 : vector<2x128xf32>
    %cst_14 = arith.constant dense<0.000000e+00> : vector<2x128xf32>
    %31 = tpu.matmul %30, %5, %cst_14 {dimension_numbers = #tpu.dot_dimension_numbers<[1], [0], [0], [1], [0, 0, 1, 1], [], []>} : vector<2x128xf32>, vector<128x128xf32>, vector<2x128xf32> -> vector<2x128xf32>
    %32 = vector.extract_strided_slice %6 {offsets = [3, 0], sizes = [1, 128], strides = [1, 1]} : vector<8x128xf32> to vector<1x128xf32>
    %33 = vector.broadcast %32 : vector<1x128xf32> to vector<2x128xf32>
    %34 = arith.addf %31, %33 : vector<2x128xf32>
    %c0_15 = arith.constant 0 : index
    %c0_16 = arith.constant 0 : index
    %c0_17 = arith.constant 0 : index
    %35 = vector.load %arg2[%c0_15, %c0_16, %c0_17] : memref<4x2x128xf32, #tpu.memory_space<vmem>>, vector<1x2x128xf32>
    %36 = vector.shape_cast %35 : vector<1x2x128xf32> to vector<2x128xf32>
    %37 = vector.shape_cast %34 : vector<2x128xf32> to vector<1x2x128xf32>
    tpu.vector_store %arg2[%c0_15, %c0_16, %c0_17], %37 {strides = array<i32>} : memref<4x2x128xf32, #tpu.memory_space<vmem>>, vector<1x2x128xf32>,
    %c1 = arith.constant 1 : index
    %c0_18 = arith.constant 0 : index
    %c0_19 = arith.constant 0 : index
    %38 = vector.load %arg2[%c1, %c0_18, %c0_19] : memref<4x2x128xf32, #tpu.memory_space<vmem>>, vector<1x2x128xf32>
    %39 = vector.shape_cast %38 : vector<1x2x128xf32> to vector<2x128xf32>
    %40 = vector.shape_cast %25 : vector<2x128xf32> to vector<1x2x128xf32>
    tpu.vector_store %arg2[%c1, %c0_18, %c0_19], %40 {strides = array<i32>} : memref<4x2x128xf32, #tpu.memory_space<vmem>>, vector<1x2x128xf32>,
    %c2 = arith.constant 2 : index
    %c0_20 = arith.constant 0 : index
    %c0_21 = arith.constant 0 : index
    %41 = vector.load %arg2[%c2, %c0_20, %c0_21] : memref<4x2x128xf32, #tpu.memory_space<vmem>>, vector<1x2x128xf32>
    %42 = vector.shape_cast %41 : vector<1x2x128xf32> to vector<2x128xf32>
    %43 = vector.shape_cast %10 : vector<2x128xf32> to vector<1x2x128xf32>
    tpu.vector_store %arg2[%c2, %c0_20, %c0_21], %43 {strides = array<i32>} : memref<4x2x128xf32, #tpu.memory_space<vmem>>, vector<1x2x128xf32>,
    %c3 = arith.constant 3 : index
    %c0_22 = arith.constant 0 : index
    %c0_23 = arith.constant 0 : index
    %44 = vector.load %arg2[%c3, %c0_22, %c0_23] : memref<4x2x128xf32, #tpu.memory_space<vmem>>, vector<1x2x128xf32>
    %45 = vector.shape_cast %44 : vector<1x2x128xf32> to vector<2x128xf32>
    %46 = vector.shape_cast %21 : vector<2x128xf32> to vector<1x2x128xf32>
    tpu.vector_store %arg2[%c3, %c0_22, %c0_23], %46 {strides = array<i32>} : memref<4x2x128xf32, #tpu.memory_space<vmem>>, vector<1x2x128xf32>,
    return
  }
}

</mosaic_0001>

<llo_original>
// kernel: rnn_classifier_nosymbol_forward.1
$region0: #{rnn_classifier_nosymbol_forward.1}
  #allocation0 [shape = 'u32[]', space=smem, size = 0x4, offset = 0x4, fixed_abs, tag = 'smem constant byte address 0x4 - core index']
  #allocation1 [shape = 'u32[144,128]{1,0:T(1,128)}', space=vmem, size = 0x12000, scoped, tag = 'internal scratch']
  %s0 = inlined_call_operand.vmem [shape: f32[2,128], index: 0, kind: input, shape index: {}]
  %s1 = inlined_call_operand.hbm [shape: f32[648,128], index: 1, kind: input, shape index: {}]
  %s2 = inlined_call_operand.vmem [shape: f32[4,2,128], index: 2, kind: output, shape index: {}]
  %s3 = sld [smem:[#allocation0]]
  $region22: #{rnn_classifier_nosymbol_forward.1} parent=0
    _
  %s5 = ssub.s32 1, %s3
  %s6 = scalar_select 0, %s5, %s3
  $region1: #{rnn_classifier_nosymbol_forward.1} parent=0
    #allocation2 [shape = 'u8[331776]{0}', space=vmem, size = 0x51000, scoped, tag = 'input window, operand 1, single buffered']
    #allocation3 [shape = 's32[1]{0}', space=sflag, size = 0x4, scoped, tag = 'scoped memory for rnn_classifier_nosymbol_forward.1']
    %7 = vsyncpa [#allocation3], 0
    // Predicated region
    $region2: #{rnn_classifier_nosymbol_forward.1} parent=1 // pred_check
      _
    $region3: #{rnn_classifier_nosymbol_forward.1} parent=1 // pred_check_branch
      %9 = sbr.rel (0) target = $region5
    $region4: #{rnn_classifier_nosymbol_forward.1} parent=1 // pred_region
      _
    $region5: #{rnn_classifier_nosymbol_forward.1} parent=1 // pred_fallthru
      _
    // Predicated region
    $region6: #{rnn_classifier_nosymbol_forward.1} parent=1 // pred_check
      _
    $region7: #{rnn_classifier_nosymbol_forward.1} parent=1 // pred_check_branch
      %11 = sbr.rel (0) target = $region9
    $region8: #{rnn_classifier_nosymbol_forward.1} parent=1 // pred_region
      %s13 = ssub.s32 10368, 10368
      %14 = vsyncadd [#allocation3], %s13
      %s15 = sshll.u32 [#allocation2], 4
      %s16 = int_to_ptr.vmem [resolvable:$true] %s15
      %21 = dma.hbm_to_vmem [thread:$0]  %s1, 10368, %s16, [#allocation3], 128, 128, 8
    $region9: #{rnn_classifier_nosymbol_forward.1} parent=1 // pred_fallthru
      _
    // Predicated region
    $region10: #{rnn_classifier_nosymbol_forward.1} parent=1 // pred_check
      _
    $region11: #{rnn_classifier_nosymbol_forward.1} parent=1 // pred_check_branch
      %23 = sbr.rel (0) target = $region13
    $region12: #{rnn_classifier_nosymbol_forward.1} parent=1 // pred_region
      %24 = dma.done [#allocation3], 10368
    $region13: #{rnn_classifier_nosymbol_forward.1} parent=1 // pred_fallthru
      _
    %v25 = vld [vmem:[%s0] sm:$0x3]
    %v26 = vld [vmem:[#allocation2] sm:$0xff]
    %v27 = vld [vmem:[#allocation2 + $0x8] sm:$0xff]
    %v28 = vld [vmem:[#allocation2 + $0x10] sm:$0xff]
    %v29 = vld [vmem:[#allocation2 + $0x18] sm:$0xff]
    %v30 = vld [vmem:[#allocation2 + $0x20] sm:$0xff]
    %v31 = vld [vmem:[#allocation2 + $0x28] sm:$0xff]
    %v32 = vld [vmem:[#allocation2 + $0x30] sm:$0xff]
    %v33 = vld [vmem:[#allocation2 + $0x38] sm:$0xff]
    %v34 = vld [vmem:[#allocation2 + $0x40] sm:$0xff]
    %v35 = vld [vmem:[#allocation2 + $0x48] sm:$0xff]
    %v36 = vld [vmem:[#allocation2 + $0x50] sm:$0xff]
    %v37 = vld [vmem:[#allocation2 + $0x58] sm:$0xff]
    %v38 = vld [vmem:[#allocation2 + $0x60] sm:$0xff]
    %v39 = vld [vmem:[#allocation2 + $0x68] sm:$0xff]
    %v40 = vld [vmem:[#allocation2 + $0x70] sm:$0xff]
    %v41 = vld [vmem:[#allocation2 + $0x78] sm:$0xff]
    %v42 = vld [vmem:[#allocation2 + $0x80] sm:$0xff]
    %v43 = vld [vmem:[#allocation2 + $0x88] sm:$0xff]
    %v44 = vld [vmem:[#allocation2 + $0x90] sm:$0xff]
    %v45 = vld [vmem:[#allocation2 + $0x98] sm:$0xff]
    %v46 = vld [vmem:[#allocation2 + $0xa0] sm:$0xff]
    %v47 = vld [vmem:[#allocation2 + $0xa8] sm:$0xff]
    %v48 = vld [vmem:[#allocation2 + $0xb0] sm:$0xff]
    %v49 = vld [vmem:[#allocation2 + $0xb8] sm:$0xff]
    %v50 = vld [vmem:[#allocation2 + $0xc0] sm:$0xff]
    %v51 = vld [vmem:[#allocation2 + $0xc8] sm:$0xff]
    %v52 = vld [vmem:[#allocation2 + $0xd0] sm:$0xff]
    %v53 = vld [vmem:[#allocation2 + $0xd8] sm:$0xff]
    %v54 = vld [vmem:[#allocation2 + $0xe0] sm:$0xff]
    %v55 = vld [vmem:[#allocation2 + $0xe8] sm:$0xff]
    %v56 = vld [vmem:[#allocation2 + $0xf0] sm:$0xff]
    %v57 = vld [vmem:[#allocation2 + $0xf8] sm:$0xff]
    %v58 = vld [vmem:[#allocation2 + $0x100] sm:$0xff]
    %v59 = vld [vmem:[#allocation2 + $0x108] sm:$0xff]
    %v60 = vld [vmem:[#allocation2 + $0x110] sm:$0xff]
    %v61 = vld [vmem:[#allocation2 + $0x118] sm:$0xff]
    %v62 = vld [vmem:[#allocation2 + $0x120] sm:$0xff]
    %v63 = vld [vmem:[#allocation2 + $0x128] sm:$0xff]
    %v64 = vld [vmem:[#allocation2 + $0x130] sm:$0xff]
    %v65 = vld [vmem:[#allocation2 + $0x138] sm:$0xff]
    %v66 = vld [vmem:[#allocation2 + $0x140] sm:$0xff]
    %v67 = vld [vmem:[#allocation2 + $0x148] sm:$0xff]
    %v68 = vld [vmem:[#allocation2 + $0x150] sm:$0xff]
    %v69 = vld [vmem:[#allocation2 + $0x158] sm:$0xff]
    %v70 = vld [vmem:[#allocation2 + $0x160] sm:$0xff]
    %v71 = vld [vmem:[#allocation2 + $0x168] sm:$0xff]
    %v72 = vld [vmem:[#allocation2 + $0x170] sm:$0xff]
    %v73 = vld [vmem:[#allocation2 + $0x178] sm:$0xff]
    %v74 = vld [vmem:[#allocation2 + $0x180] sm:$0xff]
    %v75 = vld [vmem:[#allocation2 + $0x188] sm:$0xff]
    %v76 = vld [vmem:[#allocation2 + $0x190] sm:$0xff]
    %v77 = vld [vmem:[#allocation2 + $0x198] sm:$0xff]
    %v78 = vld [vmem:[#allocation2 + $0x1a0] sm:$0xff]
    %v79 = vld [vmem:[#allocation2 + $0x1a8] sm:$0xff]
    %v80 = vld [vmem:[#allocation2 + $0x1b0] sm:$0xff]
    %v81 = vld [vmem:[#allocation2 + $0x1b8] sm:$0xff]
    %v82 = vld [vmem:[#allocation2 + $0x1c0] sm:$0xff]
    %v83 = vld [vmem:[#allocation2 + $0x1c8] sm:$0xff]
    %v84 = vld [vmem:[#allocation2 + $0x1d0] sm:$0xff]
    %v85 = vld [vmem:[#allocation2 + $0x1d8] sm:$0xff]
    %v86 = vld [vmem:[#allocation2 + $0x1e0] sm:$0xff]
    %v87 = vld [vmem:[#allocation2 + $0x1e8] sm:$0xff]
    %v88 = vld [vmem:[#allocation2 + $0x1f0] sm:$0xff]
    %v89 = vld [vmem:[#allocation2 + $0x1f8] sm:$0xff]
    %v90 = vld [vmem:[#allocation2 + $0x200] sm:$0xff]
    %v91 = vld [vmem:[#allocation2 + $0x208] sm:$0xff]
    %v92 = vld [vmem:[#allocation2 + $0x210] sm:$0xff]
    %v93 = vld [vmem:[#allocation2 + $0x218] sm:$0xff]
    %v94 = vld [vmem:[#allocation2 + $0x220] sm:$0xff]
    %v95 = vld [vmem:[#allocation2 + $0x228] sm:$0xff]
    %v96 = vld [vmem:[#allocation2 + $0x230] sm:$0xff]
    %v97 = vld [vmem:[#allocation2 + $0x238] sm:$0xff]
    %v98 = vld [vmem:[#allocation2 + $0x240] sm:$0xff]
    %v99 = vld [vmem:[#allocation2 + $0x248] sm:$0xff]
    %v100 = vld [vmem:[#allocation2 + $0x250] sm:$0xff]
    %v101 = vld [vmem:[#allocation2 + $0x258] sm:$0xff]
    %v102 = vld [vmem:[#allocation2 + $0x260] sm:$0xff]
    %v103 = vld [vmem:[#allocation2 + $0x268] sm:$0xff]
    %v104 = vld [vmem:[#allocation2 + $0x270] sm:$0xff]
    %v105 = vld [vmem:[#allocation2 + $0x278] sm:$0xff]
    %v106 = vld [vmem:[#allocation2 + $0x280] sm:$0xff]
    %v107 = vlaneseq
    %v108 = vshrl.u32 %v107, 7
    %v109 = vsub.s32 0, %v108
    %v110 = vrot.slane %v106, %v109
    %111 = vmatprep.subr.mxu0 0.0
    %112 = vmatpush1.msra.mxu0 %v41
    %113 = vmatprep.subr.mxu0 0.0
    %114 = vmatpush1.msra.mxu0 %v40
    %115 = vmatprep.subr.mxu0 0.0
    %116 = vmatpush1.msra.mxu0 %v39
    %117 = vmatprep.subr.mxu0 0.0
    %118 = vmatpush1.msra.mxu0 %v38
    %119 = vmatprep.subr.mxu0 0.0
    %120 = vmatpush1.msra.mxu0 %v37
    %121 = vmatprep.subr.mxu0 0.0
    %122 = vmatpush1.msra.mxu0 %v36
    %123 = vmatprep.subr.mxu0 0.0
    %124 = vmatpush1.msra.mxu0 %v35
    %125 = vmatprep.subr.mxu0 0.0
    %126 = vmatpush1.msra.mxu0 %v34
    %127 = vmatprep.subr.mxu0 0.0
    %128 = vmatpush1.msra.mxu0 %v33
    %129 = vmatprep.subr.mxu0 0.0
    %130 = vmatpush1.msra.mxu0 %v32
    %131 = vmatprep.subr.mxu0 0.0
    %132 = vmatpush1.msra.mxu0 %v31
    %133 = vmatprep.subr.mxu0 0.0
    %134 = vmatpush1.msra.mxu0 %v30
    %135 = vmatprep.subr.mxu0 0.0
    %136 = vmatpush1.msra.mxu0 %v29
    %137 = vmatprep.subr.mxu0 0.0
    %138 = vmatpush1.msra.mxu0 %v28
    %139 = vmatprep.subr.mxu0 0.0
    %140 = vmatpush1.msra.mxu0 %v27
    %141 = vmatprep.subr.mxu0 0.0
    %142 = vmatpush1.msra.mxu0 %v26
    %143 = vmatprep.subr.mxu0 0.0
    %144 = vmatpush2.msra.mxu0 0.0
    %145 = vmatprep.subr.mxu0 0.0
    %146 = vmatpush2.msra.mxu0 0.0
    %147 = vmatprep.subr.mxu0 0.0
    %148 = vmatpush2.msra.mxu0 0.0
    %149 = vmatprep.subr.mxu0 0.0
    %150 = vmatpush2.msra.mxu0 0.0
    %151 = vmatprep.subr.mxu0 0.0
    %152 = vmatpush2.msra.mxu0 0.0
    %153 = vmatprep.subr.mxu0 0.0
    %154 = vmatpush2.msra.mxu0 0.0
    %155 = vmatprep.subr.mxu0 0.0
    %156 = vmatpush2.msra.mxu0 0.0
    %157 = vmatprep.subr.mxu0 0.0
    %158 = vmatpush2.msra.mxu0 0.0
    %159 = vmatprep.subr.mxu0 0.0
    %160 = vmatpush2.msra.mxu0 0.0
    %161 = vmatprep.subr.mxu0 0.0
    %162 = vmatpush2.msra.mxu0 0.0
    %163 = vmatprep.subr.mxu0 0.0
    %164 = vmatpush2.msra.mxu0 0.0
    %165 = vmatprep.subr.mxu0 0.0
    %166 = vmatpush2.msra.mxu0 0.0
    %167 = vmatprep.subr.mxu0 0.0
    %168 = vmatpush2.msra.mxu0 0.0
    %169 = vmatprep.subr.mxu0 0.0
    %170 = vmatpush2.msra.mxu0 0.0
    %171 = vmatprep.subr.mxu0 0.0
    %172 = vmatpush2.msra.mxu0 0.0
    %173 = vmatprep.subr.mxu0 0.0
    %174 = vmatpush2.msra.mxu0 0.0
    %175 = vmatprep.mubr.f32.mxu0 0.0
    %176 = vmatmul.mubr.f32.gmra.mxu0 %v25
    %v177 = vpop.f32.mrf.mxu0
    %v178 = vadd.f32 %v110, %v177
    %v179 = vpop.f32.mrf.mxu0
    %180 = vdwg.mxu0
    %181 = vmatprep.subr.mxu0 0.0
    %182 = vmatpush1.msra.mxu0 %v57
    %183 = vmatprep.subr.mxu0 0.0
    %184 = vmatpush1.msra.mxu0 %v56
    %185 = vmatprep.subr.mxu0 0.0
    %186 = vmatpush1.msra.mxu0 %v55
    %187 = vmatprep.subr.mxu0 0.0
    %188 = vmatpush1.msra.mxu0 %v54
    %189 = vmatprep.subr.mxu0 0.0
    %190 = vmatpush1.msra.mxu0 %v53
    %191 = vmatprep.subr.mxu0 0.0
    %192 = vmatpush1.msra.mxu0 %v52
    %193 = vmatprep.subr.mxu0 0.0
    %194 = vmatpush1.msra.mxu0 %v51
    %195 = vmatprep.subr.mxu0 0.0
    %196 = vmatpush1.msra.mxu0 %v50
    %197 = vmatprep.subr.mxu0 0.0
    %198 = vmatpush1.msra.mxu0 %v49
    %199 = vmatprep.subr.mxu0 0.0
    %200 = vmatpush1.msra.mxu0 %v48
    %201 = vmatprep.subr.mxu0 0.0
    %202 = vmatpush1.msra.mxu0 %v47
    %203 = vmatprep.subr.mxu0 0.0
    %204 = vmatpush1.msra.mxu0 %v46
    %205 = vmatprep.subr.mxu0 0.0
    %206 = vmatpush1.msra.mxu0 %v45
    %207 = vmatprep.subr.mxu0 0.0
    %208 = vmatpush1.msra.mxu0 %v44
    %209 = vmatprep.subr.mxu0 0.0
    %210 = vmatpush1.msra.mxu0 %v43
    %211 = vmatprep.subr.mxu0 0.0
    %212 = vmatpush1.msra.mxu0 %v42
    %213 = vmatprep.subr.mxu0 0.0
    %214 = vmatpush2.msra.mxu0 0.0
    %215 = vmatprep.subr.mxu0 0.0
    %216 = vmatpush2.msra.mxu0 0.0
    %217 = vmatprep.subr.mxu0 0.0
    %218 = vmatpush2.msra.mxu0 0.0
    %219 = vmatprep.subr.mxu0 0.0
    %220 = vmatpush2.msra.mxu0 0.0
    %221 = vmatprep.subr.mxu0 0.0
    %222 = vmatpush2.msra.mxu0 0.0
    %223 = vmatprep.subr.mxu0 0.0
    %224 = vmatpush2.msra.mxu0 0.0
    %225 = vmatprep.subr.mxu0 0.0
    %226 = vmatpush2.msra.mxu0 0.0
    %227 = vmatprep.subr.mxu0 0.0
    %228 = vmatpush2.msra.mxu0 0.0
    %229 = vmatprep.subr.mxu0 0.0
    %230 = vmatpush2.msra.mxu0 0.0
    %231 = vmatprep.subr.mxu0 0.0
    %232 = vmatpush2.msra.mxu0 0.0
    %233 = vmatprep.subr.mxu0 0.0
    %234 = vmatpush2.msra.mxu0 0.0
    %235 = vmatprep.subr.mxu0 0.0
    %236 = vmatpush2.msra.mxu0 0.0
    %237 = vmatprep.subr.mxu0 0.0
    %238 = vmatpush2.msra.mxu0 0.0
    %239 = vmatprep.subr.mxu0 0.0
    %240 = vmatpush2.msra.mxu0 0.0
    %241 = vmatprep.subr.mxu0 0.0
    %242 = vmatpush2.msra.mxu0 0.0
    %243 = vmatprep.subr.mxu0 0.0
    %244 = vmatpush2.msra.mxu0 0.0
    %245 = vmatprep.mubr.f32.mxu0 0.0
    %246 = vmatmul.mubr.f32.gmra.mxu0 %v25
    %v247 = vpop.f32.mrf.mxu0
    %v248 = vadd.f32 0.0, %v247
    %v249 = vpop.f32.mrf.mxu0
    %250 = vdwg.mxu0
    %vm251 = vcmp.gt.f32.partialorder %v178, 0.0
    %v252 = vmul.f32 %v178, 0.1
    %v253 = vsel %vm251, %v178, %v252
    %254 = vmatprep.subr.mxu0 0.0
    %255 = vmatpush1.msra.mxu0 %v73
    %256 = vmatprep.subr.mxu0 0.0
    %257 = vmatpush1.msra.mxu0 %v72
    %258 = vmatprep.subr.mxu0 0.0
    %259 = vmatpush1.msra.mxu0 %v71
    %260 = vmatprep.subr.mxu0 0.0
    %261 = vmatpush1.msra.mxu0 %v70
    %262 = vmatprep.subr.mxu0 0.0
    %263 = vmatpush1.msra.mxu0 %v69
    %264 = vmatprep.subr.mxu0 0.0
    %265 = vmatpush1.msra.mxu0 %v68
    %266 = vmatprep.subr.mxu0 0.0
    %267 = vmatpush1.msra.mxu0 %v67
    %268 = vmatprep.subr.mxu0 0.0
    %269 = vmatpush1.msra.mxu0 %v66
    %270 = vmatprep.subr.mxu0 0.0
    %271 = vmatpush1.msra.mxu0 %v65
    %272 = vmatprep.subr.mxu0 0.0
    %273 = vmatpush1.msra.mxu0 %v64
    %274 = vmatprep.subr.mxu0 0.0
    %275 = vmatpush1.msra.mxu0 %v63
    %276 = vmatprep.subr.mxu0 0.0
    %277 = vmatpush1.msra.mxu0 %v62
    %278 = vmatprep.subr.mxu0 0.0
    %279 = vmatpush1.msra.mxu0 %v61
    %280 = vmatprep.subr.mxu0 0.0
    %281 = vmatpush1.msra.mxu0 %v60
    %282 = vmatprep.subr.mxu0 0.0
    %283 = vmatpush1.msra.mxu0 %v59
    %284 = vmatprep.subr.mxu0 0.0
    %285 = vmatpush1.msra.mxu0 %v58
    %286 = vmatprep.subr.mxu0 0.0
    %287 = vmatpush2.msra.mxu0 0.0
    %288 = vmatprep.subr.mxu0 0.0
    %289 = vmatpush2.msra.mxu0 0.0
    %290 = vmatprep.subr.mxu0 0.0
    %291 = vmatpush2.msra.mxu0 0.0
    %292 = vmatprep.subr.mxu0 0.0
    %293 = vmatpush2.msra.mxu0 0.0
    %294 = vmatprep.subr.mxu0 0.0
    %295 = vmatpush2.msra.mxu0 0.0
    %296 = vmatprep.subr.mxu0 0.0
    %297 = vmatpush2.msra.mxu0 0.0
    %298 = vmatprep.subr.mxu0 0.0
    %299 = vmatpush2.msra.mxu0 0.0
    %300 = vmatprep.subr.mxu0 0.0
    %301 = vmatpush2.msra.mxu0 0.0
    %302 = vmatprep.subr.mxu0 0.0
    %303 = vmatpush2.msra.mxu0 0.0
    %304 = vmatprep.subr.mxu0 0.0
    %305 = vmatpush2.msra.mxu0 0.0
    %306 = vmatprep.subr.mxu0 0.0
    %307 = vmatpush2.msra.mxu0 0.0
    %308 = vmatprep.subr.mxu0 0.0
    %309 = vmatpush2.msra.mxu0 0.0
    %310 = vmatprep.subr.mxu0 0.0
    %311 = vmatpush2.msra.mxu0 0.0
    %312 = vmatprep.subr.mxu0 0.0
    %313 = vmatpush2.msra.mxu0 0.0
    %314 = vmatprep.subr.mxu0 0.0
    %315 = vmatpush2.msra.mxu0 0.0
    %316 = vmatprep.subr.mxu0 0.0
    %317 = vmatpush2.msra.mxu0 0.0
    %318 = vmatprep.mubr.f32.mxu0 0.0
    %319 = vmatmul.mubr.f32.gmra.mxu0 %v253
    %v320 = vpop.f32.mrf.mxu0
    %v321 = vadd.f32 %v248, %v320
    %v322 = vpop.f32.mrf.mxu0
    %323 = vdwg.mxu0
    %v324 = vlaneseq
    %v325 = vshrl.u32 %v324, 7
    %v326 = vsub.s32 1, %v325
    %v327 = vrot.slane %v106, %v326
    %v328 = vadd.f32 %v321, %v327
    %v329 = vlaneseq
    %v330 = vshrl.u32 %v329, 7
    %v331 = vsub.s32 2, %v330
    %v332 = vrot.slane %v106, %v331
    %333 = vmatprep.subr.mxu0 0.0
    %334 = vmatpush1.msra.mxu0 %v89
    %335 = vmatprep.subr.mxu0 0.0
    %336 = vmatpush1.msra.mxu0 %v88
    %337 = vmatprep.subr.mxu0 0.0
    %338 = vmatpush1.msra.mxu0 %v87
    %339 = vmatprep.subr.mxu0 0.0
    %340 = vmatpush1.msra.mxu0 %v86
    %341 = vmatprep.subr.mxu0 0.0
    %342 = vmatpush1.msra.mxu0 %v85
    %343 = vmatprep.subr.mxu0 0.0
    %344 = vmatpush1.msra.mxu0 %v84
    %345 = vmatprep.subr.mxu0 0.0
    %346 = vmatpush1.msra.mxu0 %v83
    %347 = vmatprep.subr.mxu0 0.0
    %348 = vmatpush1.msra.mxu0 %v82
    %349 = vmatprep.subr.mxu0 0.0
    %350 = vmatpush1.msra.mxu0 %v81
    %351 = vmatprep.subr.mxu0 0.0
    %352 = vmatpush1.msra.mxu0 %v80
    %353 = vmatprep.subr.mxu0 0.0
    %354 = vmatpush1.msra.mxu0 %v79
    %355 = vmatprep.subr.mxu0 0.0
    %356 = vmatpush1.msra.mxu0 %v78
    %357 = vmatprep.subr.mxu0 0.0
    %358 = vmatpush1.msra.mxu0 %v77
    %359 = vmatprep.subr.mxu0 0.0
    %360 = vmatpush1.msra.mxu0 %v76
    %361 = vmatprep.subr.mxu0 0.0
    %362 = vmatpush1.msra.mxu0 %v75
    %363 = vmatprep.subr.mxu0 0.0
    %364 = vmatpush1.msra.mxu0 %v74
    %365 = vmatprep.subr.mxu0 0.0
    %366 = vmatpush2.msra.mxu0 0.0
    %367 = vmatprep.subr.mxu0 0.0
    %368 = vmatpush2.msra.mxu0 0.0
    %369 = vmatprep.subr.mxu0 0.0
    %370 = vmatpush2.msra.mxu0 0.0
    %371 = vmatprep.subr.mxu0 0.0
    %372 = vmatpush2.msra.mxu0 0.0
    %373 = vmatprep.subr.mxu0 0.0
    %374 = vmatpush2.msra.mxu0 0.0
    %375 = vmatprep.subr.mxu0 0.0
    %376 = vmatpush2.msra.mxu0 0.0
    %377 = vmatprep.subr.mxu0 0.0
    %378 = vmatpush2.msra.mxu0 0.0
    %379 = vmatprep.subr.mxu0 0.0
    %380 = vmatpush2.msra.mxu0 0.0
    %381 = vmatprep.subr.mxu0 0.0
    %382 = vmatpush2.msra.mxu0 0.0
    %383 = vmatprep.subr.mxu0 0.0
    %384 = vmatpush2.msra.mxu0 0.0
    %385 = vmatprep.subr.mxu0 0.0
    %386 = vmatpush2.msra.mxu0 0.0
    %387 = vmatprep.subr.mxu0 0.0
    %388 = vmatpush2.msra.mxu0 0.0
    %389 = vmatprep.subr.mxu0 0.0
    %390 = vmatpush2.msra.mxu0 0.0
    %391 = vmatprep.subr.mxu0 0.0
    %392 = vmatpush2.msra.mxu0 0.0
    %393 = vmatprep.subr.mxu0 0.0
    %394 = vmatpush2.msra.mxu0 0.0
    %395 = vmatprep.subr.mxu0 0.0
    %396 = vmatpush2.msra.mxu0 0.0
    %397 = vmatprep.mubr.f32.mxu0 0.0
    %398 = vmatmul.mubr.f32.gmra.mxu0 %v328
    %v399 = vpop.f32.mrf.mxu0
    %v400 = vadd.f32 %v332, %v399
    %v401 = vpop.f32.mrf.mxu0
    %402 = vdwg.mxu0
    %v403 = vxor.u32 %v400, 2147483648
    %v404 = vmul.f32 %v403, 1.442695
    %v405 = vpow.pop %v404
    %v406 = vadd.f32 %v405, 1.0
    %v407 = vrcp.pop %v406
    %v408 = vmul.f32 1.0, %v407
    %v409 = vlaneseq
    %v410 = vshrl.u32 %v409, 7
    %v411 = vsub.s32 3, %v410
    %v412 = vrot.slane %v106, %v411
    %413 = vmatprep.subr.mxu0 0.0
    %414 = vmatpush1.msra.mxu0 %v105
    %415 = vmatprep.subr.mxu0 0.0
    %416 = vmatpush1.msra.mxu0 %v104
    %417 = vmatprep.subr.mxu0 0.0
    %418 = vmatpush1.msra.mxu0 %v103
    %419 = vmatprep.subr.mxu0 0.0
    %420 = vmatpush1.msra.mxu0 %v102
    %421 = vmatprep.subr.mxu0 0.0
    %422 = vmatpush1.msra.mxu0 %v101
    %423 = vmatprep.subr.mxu0 0.0
    %424 = vmatpush1.msra.mxu0 %v100
    %425 = vmatprep.subr.mxu0 0.0
    %426 = vmatpush1.msra.mxu0 %v99
    %427 = vmatprep.subr.mxu0 0.0
    %428 = vmatpush1.msra.mxu0 %v98
    %429 = vmatprep.subr.mxu0 0.0
    %430 = vmatpush1.msra.mxu0 %v97
    %431 = vmatprep.subr.mxu0 0.0
    %432 = vmatpush1.msra.mxu0 %v96
    %433 = vmatprep.subr.mxu0 0.0
    %434 = vmatpush1.msra.mxu0 %v95
    %435 = vmatprep.subr.mxu0 0.0
    %436 = vmatpush1.msra.mxu0 %v94
    %437 = vmatprep.subr.mxu0 0.0
    %438 = vmatpush1.msra.mxu0 %v93
    %439 = vmatprep.subr.mxu0 0.0
    %440 = vmatpush1.msra.mxu0 %v92
    %441 = vmatprep.subr.mxu0 0.0
    %442 = vmatpush1.msra.mxu0 %v91
    %443 = vmatprep.subr.mxu0 0.0
    %444 = vmatpush1.msra.mxu0 %v90
    %445 = vmatprep.subr.mxu0 0.0
    %446 = vmatpush2.msra.mxu0 0.0
    %447 = vmatprep.subr.mxu0 0.0
    %448 = vmatpush2.msra.mxu0 0.0
    %449 = vmatprep.subr.mxu0 0.0
    %450 = vmatpush2.msra.mxu0 0.0
    %451 = vmatprep.subr.mxu0 0.0
    %452 = vmatpush2.msra.mxu0 0.0
    %453 = vmatprep.subr.mxu0 0.0
    %454 = vmatpush2.msra.mxu0 0.0
    %455 = vmatprep.subr.mxu0 0.0
    %456 = vmatpush2.msra.mxu0 0.0
    %457 = vmatprep.subr.mxu0 0.0
    %458 = vmatpush2.msra.mxu0 0.0
    %459 = vmatprep.subr.mxu0 0.0
    %460 = vmatpush2.msra.mxu0 0.0
    %461 = vmatprep.subr.mxu0 0.0
    %462 = vmatpush2.msra.mxu0 0.0
    %463 = vmatprep.subr.mxu0 0.0
    %464 = vmatpush2.msra.mxu0 0.0
    %465 = vmatprep.subr.mxu0 0.0
    %466 = vmatpush2.msra.mxu0 0.0
    %467 = vmatprep.subr.mxu0 0.0
    %468 = vmatpush2.msra.mxu0 0.0
    %469 = vmatprep.subr.mxu0 0.0
    %470 = vmatpush2.msra.mxu0 0.0
    %471 = vmatprep.subr.mxu0 0.0
    %472 = vmatpush2.msra.mxu0 0.0
    %473 = vmatprep.subr.mxu0 0.0
    %474 = vmatpush2.msra.mxu0 0.0
    %475 = vmatprep.subr.mxu0 0.0
    %476 = vmatpush2.msra.mxu0 0.0
    %477 = vmatprep.mubr.f32.mxu0 0.0
    %478 = vmatmul.mubr.f32.gmra.mxu0 %v408
    %v479 = vpop.f32.mrf.mxu0
    %v480 = vadd.f32 %v412, %v479
    %v481 = vpop.f32.mrf.mxu0
    %482 = vdwg.mxu0
    %483 = vst [vmem:[%s2] sm:$0x3] %v480
    %s484 = scalar_lea.vmem %s2, 2
    %485 = vst [vmem:[%s484] sm:$0x3] %v400
    %s486 = scalar_lea.vmem %s2, 4
    %487 = vst [vmem:[%s486] sm:$0x3] %v178
    %s488 = scalar_lea.vmem %s2, 6
    %489 = vst [vmem:[%s488] sm:$0x3] %v328
    // Predicated region
    $region14: #{rnn_classifier_nosymbol_forward.1} parent=1 // pred_check
      _
    $region15: #{rnn_classifier_nosymbol_forward.1} parent=1 // pred_check_branch
      %491 = sbr.rel (0) target = $region17
    $region16: #{rnn_classifier_nosymbol_forward.1} parent=1 // pred_region
      _
    $region17: #{rnn_classifier_nosymbol_forward.1} parent=1 // pred_fallthru
      _
    // Predicated region
    $region18: #{rnn_classifier_nosymbol_forward.1} parent=1 // pred_check
      _
    $region19: #{rnn_classifier_nosymbol_forward.1} parent=1 // pred_check_branch
      %493 = sbr.rel (0) target = $region21
    $region20: #{rnn_classifier_nosymbol_forward.1} parent=1 // pred_region
      _
    $region21: #{rnn_classifier_nosymbol_forward.1} parent=1 // pred_fallthru
      _
    %494 = vsyncpa [#allocation3], 1

</llo_original>
